<compile_context>
chip_gen: v6e
topology: v6e:2x2x1
jax: 0.10.0
libtpu: 0.0.40
codegen_flags: <defaults>
</compile_context>

<pallas_src>
import functools

import jax
import jax.numpy as jnp
from jax.experimental import pallas as pl
from jax.experimental.pallas import tpu as pltpu

LANE = 128  # TPU lane width; each of Q/K/V padded to this many output columns.


def sa_v2_kernel(x_ref, wqkv_ref, o_ref):
    """One grid step = `block_b` independent sequences.

    x_ref:    (Bt, S, d_in)   f32
    wqkv_ref: (d_in, 3*LANE)  f32  -- [Wq*scale | Wk | Wv], each zero-padded to
                                      LANE output columns, pre-transposed host-side.
    o_ref:    (Bt, S, LANE)   f32  -- lane-dense; real context lives in [..., :d_out].
    """
    bt, s, d_in = x_ref.shape
    d_pad = o_ref.shape[-1]

    x = x_ref[...]
    w = wqkv_ref[...]

    # Fused QKV projection with M = Bt*S rows in a single MXU matmul.
    # S == 8 sublanes, so this reshape is tile-aligned (no VMEM copy).
    qkv = jnp.dot(x.reshape(bt * s, d_in), w,
                  preferred_element_type=jnp.float32)          # (Bt*S, 3*LANE)
    qkv = qkv.reshape(bt, s, 3 * d_pad)

    # Lane-aligned (multiple-of-128) slices: no relayout between matmuls.
    q = qkv[:, :, 0 * d_pad:1 * d_pad]   # 1/sqrt(d_out) already folded into Wq
    k = qkv[:, :, 1 * d_pad:2 * d_pad]
    v = qkv[:, :, 2 * d_pad:3 * d_pad]

    # Per-sequence scores: contract the padded feature dim (zero columns are inert).
    scores = jnp.einsum('bqd,bkd->bqk', q, k,
                        preferred_element_type=jnp.float32)    # (Bt, S, S)

    # Row softmax (dim=-1), numerically stable; divide via EUP reciprocal + vmul.
    row_max = jnp.max(scores, axis=-1, keepdims=True)
    p = jnp.exp(scores - row_max)
    denom = jnp.sum(p, axis=-1, keepdims=True)
    attn = p * pl.reciprocal(denom, approx=False)

    # Lane-dense (S, 128) stores per sequence: unmasked vst, no padded writeback.
    o_ref[...] = jnp.einsum('bqk,bkd->bqd', attn, v,
                            preferred_element_type=jnp.float32)


def fuse_qkv_weights(w_query, w_key, w_value, d_pad=LANE):
    """Host-side weight prep (hoist to parameter-load time when called repeatedly):
    fuse Q/K/V, fold the softmax scale into W_query, pad each block to a 128-lane
    boundary, and pre-transpose to (d_in, 3*d_pad)."""
    d_out, d_in = w_query.shape
    assert d_out <= d_pad
    scale = 1.0 / jnp.sqrt(jnp.float32(d_out))

    def prep(w):  # (d_out, d_in) -> (d_in, d_pad), zero-padded lane block
        return jnp.pad(w.T, ((0, 0), (0, d_pad - d_out)))

    return jnp.concatenate(
        [prep(w_query * scale), prep(w_key), prep(w_value)], axis=1)


@functools.partial(jax.jit, static_argnames=("d_out", "block_b"))
def _sa_v2_batched(x, w_qkv, *, d_out, block_b):
    B, S, d_in = x.shape
    d_pad = w_qkv.shape[1] // 3

    out_pad = pl.pallas_call(
        sa_v2_kernel,
        out_shape=jax.ShapeDtypeStruct((B, S, d_pad), jnp.float32),
        grid=(B // block_b,),
        in_specs=[
            pl.BlockSpec((block_b, S, d_in), lambda b: (b, 0, 0)),
            pl.BlockSpec((d_in, 3 * d_pad), lambda b: (0, 0)),
        ],
        out_specs=pl.BlockSpec((block_b, S, d_pad), lambda b: (b, 0, 0)),
        compiler_params=pltpu.CompilerParams(
            dimension_semantics=("parallel",)),   # shards batch over v7x's 2 TCs
    )(x, w_qkv)
    return out_pad[:, :, :d_out]


def sa_v2_forward(x, w_query, w_key, w_value, *, block_b=4):
    """Forward of the sa_v2 module.

    x: (S, d_in) or (B, S, d_in) f32;  w_*: (d_out, d_in) f32 (nn.Linear, bias=False).
    Returns (S, d_out) or (B, S, d_out) context vectors.
    """
    d_out = w_query.shape[0]
    w_qkv = fuse_qkv_weights(w_query, w_key, w_value)

    squeeze = x.ndim == 2
    if squeeze:
        x = x[None]
    B = x.shape[0]

    # Pad the batch to a multiple of the per-step block; padded rows are zero
    # (softmax of zero scores is uniform, context is zero — no NaNs) and discarded.
    bb = min(block_b, B)
    B_pad = pl.cdiv(B, bb) * bb
    if B_pad != B:
        x = jnp.pad(x, ((0, B_pad - B), (0, 0), (0, 0)))

    out = _sa_v2_batched(x, w_qkv, d_out=d_out, block_b=bb)[:B]
    return out[0] if squeeze else out


def _reference(x, w_query, w_key, w_value):
    q = x @ w_query.T
    k = x @ w_key.T
    v = x @ w_value.T
    scores = jnp.einsum('...qd,...kd->...qk', q, k)
    w = jax.nn.softmax(scores / jnp.sqrt(jnp.float32(k.shape[-1])), axis=-1)
    return jnp.einsum('...qk,...kd->...qd', w, v)


if __name__ == "__main__":
    # Small shapes consistent with the module: 8 sequences of 8 tokens, d_in=32, d_out=16.
    B, S, d_in, d_out = 8, 8, 32, 16

    key = jax.random.PRNGKey(0)
    kx, kq, kk, kv = jax.random.split(key, 4)

    x = jax.random.uniform(kx, (B, S, d_in), dtype=jnp.float32)

    # Deterministic nn.Linear-style init: U(-1/sqrt(d_in), 1/sqrt(d_in)), bias=False.
    bound = 1.0 / jnp.sqrt(jnp.float32(d_in))
    w_query = jax.random.uniform(kq, (d_out, d_in), jnp.float32, -bound, bound)
    w_key = jax.random.uniform(kk, (d_out, d_in), jnp.float32, -bound, bound)
    w_value = jax.random.uniform(kv, (d_out, d_in), jnp.float32, -bound, bound)

    out = sa_v2_forward(x, w_query, w_key, w_value, block_b=4)
    out = jax.block_until_ready(out)

    ref = _reference(x, w_query, w_key, w_value)
    assert out.shape == (B, S, d_out)
    assert jnp.allclose(out, ref, atol=1e-5, rtol=1e-5), "mismatch vs reference (batched)"

    # Unbatched (S, d_in) call path — exact module signature.
    out1 = jax.block_until_ready(sa_v2_forward(x[0], w_query, w_key, w_value))
    assert out1.shape == (S, d_out)
    assert jnp.allclose(out1, ref[0], atol=1e-5, rtol=1e-5), "mismatch vs reference (single)"

    print("KERNEL_OK")
</pallas_src>

<mosaic_0001>
module attributes {stable_mosaic.version = 11 : i64} {
  func.func @sa_v2_kernel(%arg0: i32, %arg1: memref<4x8x32xf32, #tpu.memory_space<vmem>>, %arg2: memref<32x384xf32, #tpu.memory_space<vmem>>, %arg3: memref<4x8x128xf32, #tpu.memory_space<vmem>>) attributes {dimension_semantics = [#tpu.dimension_semantics<parallel>], iteration_bounds = array<i64: 2>, scalar_prefetch = 0 : i64, scratch_operands = 0 : i64, tpu.core_type = #tpu.core_type<tc>, window_params = [{transform_indices = @transform_0, window_bounds = array<i64: 4, 8, 32>}, {pipeline_mode = #tpu.pipeline_mode<synchronous>, transform_indices = @transform_1, window_bounds = array<i64: 32, 384>}, {transform_indices = @transform_2, window_bounds = array<i64: 4, 8, 128>}]} {
    %c0 = arith.constant 0 : index
    %c0_0 = arith.constant 0 : index
    %c0_1 = arith.constant 0 : index
    %0 = vector.load %arg1[%c0, %c0_0, %c0_1] : memref<4x8x32xf32, #tpu.memory_space<vmem>>, vector<4x8x32xf32>
    %c0_2 = arith.constant 0 : index
    %c0_3 = arith.constant 0 : index
    %1 = vector.load %arg2[%c0_2, %c0_3] : memref<32x384xf32, #tpu.memory_space<vmem>>, vector<32x384xf32>
    %2 = vector.shape_cast %0 : vector<4x8x32xf32> to vector<32x32xf32>
    %cst = arith.constant dense<0.000000e+00> : vector<32x384xf32>
    %3 = tpu.matmul %2, %1, %cst {dimension_numbers = #tpu.dot_dimension_numbers<[1], [0], [0], [1], [0, 0, 1, 1], [], []>} : vector<32x32xf32>, vector<32x384xf32>, vector<32x384xf32> -> vector<32x384xf32>
    %4 = vector.shape_cast %3 : vector<32x384xf32> to vector<4x8x384xf32>
    %5 = vector.extract_strided_slice %4 {offsets = [0, 0, 0], sizes = [4, 8, 128], strides = [1, 1, 1]} : vector<4x8x384xf32> to vector<4x8x128xf32>
    %6 = vector.extract_strided_slice %4 {offsets = [0, 0, 128], sizes = [4, 8, 128], strides = [1, 1, 1]} : vector<4x8x384xf32> to vector<4x8x128xf32>
    %7 = vector.extract_strided_slice %4 {offsets = [0, 0, 256], sizes = [4, 8, 128], strides = [1, 1, 1]} : vector<4x8x384xf32> to vector<4x8x128xf32>
    "tpu.trace_start"() <{level = 10 : i32, message = "bqd,bkd->bqk"}> : () -> ()
    %cst_4 = arith.constant dense<0.000000e+00> : vector<4x8x8xf32>
    %8 = tpu.matmul %5, %6, %cst_4 {dimension_numbers = #tpu.dot_dimension_numbers<[2], [2], [1], [1], [0, 0, 0, 1, 1, 1], [0], [0]>} : vector<4x8x128xf32>, vector<4x8x128xf32>, vector<4x8x8xf32> -> vector<4x8x8xf32>
    "tpu.trace_stop"() : () -> ()
    %cst_5 = arith.constant dense<0xFF800000> : vector<4x8xf32>
    %9 = vector.multi_reduction <maximumf>, %8, %cst_5 [2] : vector<4x8x8xf32> to vector<4x8xf32>
    %10 = vector.shape_cast %9 : vector<4x8xf32> to vector<4x8x1xf32>
    %11 = vector.broadcast %10 : vector<4x8x1xf32> to vector<4x8x8xf32>
    %12 = arith.subf %8, %11 : vector<4x8x8xf32>
    %13 = math.exp %12 : vector<4x8x8xf32>
    %cst_6 = arith.constant dense<0.000000e+00> : vector<4x8xf32>
    %14 = vector.multi_reduction <add>, %13, %cst_6 [2] : vector<4x8x8xf32> to vector<4x8xf32>
    %15 = vector.shape_cast %14 : vector<4x8xf32> to vector<4x8x1xf32>
    %16 = tpu.reciprocal %15 : vector<4x8x1xf32> -> vector<4x8x1xf32>
    %17 = vector.broadcast %16 : vector<4x8x1xf32> to vector<4x8x8xf32>
    %18 = arith.mulf %13, %17 : vector<4x8x8xf32>
    "tpu.trace_start"() <{level = 10 : i32, message = "bqk,bkd->bqd"}> : () -> ()
    %cst_7 = arith.constant dense<0.000000e+00> : vector<4x8x128xf32>
    %19 = tpu.matmul %18, %7, %cst_7 {dimension_numbers = #tpu.dot_dimension_numbers<[2], [1], [1], [2], [0, 0, 0, 1, 1, 2], [0], [0]>} : vector<4x8x8xf32>, vector<4x8x128xf32>, vector<4x8x128xf32> -> vector<4x8x128xf32>
    "tpu.trace_stop"() : () -> ()
    %c0_8 = arith.constant 0 : index
    %c0_9 = arith.constant 0 : index
    %c0_10 = arith.constant 0 : index
    %20 = vector.load %arg3[%c0_8, %c0_9, %c0_10] : memref<4x8x128xf32, #tpu.memory_space<vmem>>, vector<4x8x128xf32>
    tpu.vector_store %arg3[%c0_8, %c0_9, %c0_10], %19 {strides = array<i32>} : memref<4x8x128xf32, #tpu.memory_space<vmem>>, vector<4x8x128xf32>,
    return
  }
  func.func @transform_0(%arg0: i32) -> (i32, i32, i32) {
    %c0_i32 = arith.constant 0 : i32
    %c0_i32_0 = arith.constant 0 : i32
    %c0_i32_1 = arith.constant 0 : i32
    return %arg0, %c0_i32, %c0_i32_0 : i32, i32, i32
  }
  func.func @transform_1(%arg0: i32) -> (i32, i32) {
    %c0_i32 = arith.constant 0 : i32
    %c0_i32_0 = arith.constant 0 : i32
    %c0_i32_1 = arith.constant 0 : i32
    return %c0_i32, %c0_i32_0 : i32, i32
  }
  func.func @transform_2(%arg0: i32) -> (i32, i32, i32) {
    %c0_i32 = arith.constant 0 : i32
    %c0_i32_0 = arith.constant 0 : i32
    %c0_i32_1 = arith.constant 0 : i32
    return %arg0, %c0_i32, %c0_i32_0 : i32, i32, i32
  }
}

</mosaic_0001>

<llo_original>
// kernel: _sa_v2_batched.1
$region0: #{_sa_v2_batched.1}
  #allocation0 [shape = 'u32[]', space=smem, size = 0x4, offset = 0x4, fixed_abs, tag = 'smem constant byte address 0x4 - core index']
  #allocation1 [shape = 'u32[144,128]{1,0:T(1,128)}', space=vmem, size = 0x12000, scoped, tag = 'internal scratch']
  %s0 = inlined_call_operand.hbm [shape: f32[8,8,32], index: 0, kind: input, shape index: {}]
  %s1 = inlined_call_operand.hbm [shape: f32[32,384], index: 1, kind: input, shape index: {}]
  %s2 = inlined_call_operand.hbm [shape: f32[8,8,128], index: 2, kind: output, shape index: {}]
  %s3 = sld [smem:[#allocation0]]
  $region49: #{_sa_v2_batched.1} parent=0
    _
  %s5 = ssub.s32 1, %s3
  %s6 = scalar_select 0, %s5, %s3
  $region1: #{_sa_v2_batched.1} parent=0
    #allocation2 [shape = 'u8[32768]{0}', space=vmem, size = 0x8000, scoped, tag = 'input window, operand 0']
    #allocation3 [shape = 's32[2]{0}', space=sflag, size = 0x8, scoped, tag = 'scoped memory for _sa_v2_batched.1']
    #allocation4 [shape = 's32[2]{0}', space=sflag, size = 0x8, scoped, tag = 'scoped memory for _sa_v2_batched.1']
    #allocation5 [shape = 'u8[49152]{0}', space=vmem, size = 0xc000, scoped, tag = 'input window, operand 1, single buffered']
    #allocation6 [shape = 's32[1]{0}', space=sflag, size = 0x4, scoped, tag = 'scoped memory for _sa_v2_batched.1']
    #allocation7 [shape = 'u8[32768]{0}', space=vmem, size = 0x8000, scoped, tag = 'output window, operand 0']
    %7 = vsyncpa [#allocation3], 0
    %s8 = scalar_lea.sflag [#allocation3], 1
    %9 = vsyncpa %s8, 0
    %10 = vsyncpa [#allocation6], 0
    %11 = vsyncpa [#allocation4], 0
    %s12 = scalar_lea.sflag [#allocation4], 1
    %13 = vsyncpa %s12, 0
    loop: start=0, step=1, limit=4
    $region2: #{_sa_v2_batched.1} parent=1 // loop_pre_header
      _
    $region3: #{_sa_v2_batched.1} parent=1 // loop_header
      %s15 = sphi 0, %s19
      %p16 = scmp.ge.s32.totalorder %s15, 4
      %s25 = sphi 0, %s27
      %s28 = sphi 0, %s25
      %s29 = sphi 0, %s28
      %s45 = sphi 0, %s29
      %s49 = sphi 0, %s49
      %s51 = sphi 0, %s49
      %s52 = sphi 0, %s51
      %s66 = sphi 0, %s52
      %s72 = sphi 0, %s74
      %s75 = sphi 0, %s72
      %s76 = sphi 0, %s75
      %s92 = sphi 0, %s76
    $region4: #{_sa_v2_batched.1} parent=1 // loop_header_branch
      %18 = sbr.rel (%p16) target = $region8
    $region5: #{_sa_v2_batched.1} parent=1 // loop_body
      %s20 = ssub.s32 %s15, 1
      %s21 = ssub.s32 %s15, 2
      %s22 = sadd.s32 %s15, 1
      %s23 = ssub.s32 %s15, %s22
      %p24 = scmp.eq.s32.totalorder %s23, 0
      %s26 = sadd.s32 %s25, 1
      %s27 = scalar_select %p24, %s25, %s26
      %p30 = pneg %p24
      %p31 = scmp.eq.s32.totalorder %s15, 1
      %p32 = por %p30, %p31
      %p33 = scmp.ne.s32.totalorder %s25, %s28
      %p34 = scmp.eq.s32.totalorder %s15, 0
      %p35 = por %p33, %p34
      %p36 = scmp.ne.s32.totalorder %s25, %s28
      %p37 = scmp.eq.s32.totalorder %s20, 1
      %p38 = por %p36, %p37
      %p39 = scmp.ne.s32.totalorder %s28, %s29
      %p40 = scmp.eq.s32.totalorder %s20, 0
      %p41 = por %p39, %p40
      %p42 = scmp.ne.s32.totalorder %s28, %s29
      %p43 = scmp.eq.s32.totalorder %s21, 1
      %p44 = por %p42, %p43
      %p46 = scmp.ne.s32.totalorder %s29, %s45
      %p47 = scmp.eq.s32.totalorder %s21, 0
      %p48 = por %p46, %p47
      %s50 = sadd.s32 %s49, 1
      %p53 = scmp.eq.s32.totalorder %s15, 1
      %p54 = scmp.ne.s32.totalorder %s49, %s51
      %p55 = scmp.eq.s32.totalorder %s15, 0
      %p56 = por %p54, %p55
      %p57 = scmp.ne.s32.totalorder %s49, %s51
      %p58 = scmp.eq.s32.totalorder %s20, 1
      %p59 = por %p57, %p58
      %p60 = scmp.ne.s32.totalorder %s51, %s52
      %p61 = scmp.eq.s32.totalorder %s20, 0
      %p62 = por %p60, %p61
      %p63 = scmp.ne.s32.totalorder %s51, %s52
      %p64 = scmp.eq.s32.totalorder %s21, 1
      %p65 = por %p63, %p64
      %p67 = scmp.ne.s32.totalorder %s52, %s66
      %p68 = scmp.eq.s32.totalorder %s21, 0
      %p69 = por %p67, %p68
      %s70 = ssub.s32 %s15, %s22
      %p71 = scmp.eq.s32.totalorder %s70, 0
      %s73 = sadd.s32 %s72, 1
      %s74 = scalar_select %p71, %s72, %s73
      %p77 = pneg %p71
      %p78 = scmp.eq.s32.totalorder %s15, 1
      %p79 = por %p77, %p78
      %p80 = scmp.ne.s32.totalorder %s72, %s75
      %p81 = scmp.eq.s32.totalorder %s15, 0
      %p82 = por %p80, %p81
      %p83 = scmp.ne.s32.totalorder %s72, %s75
      %p84 = scmp.eq.s32.totalorder %s20, 1
      %p85 = por %p83, %p84
      %p86 = scmp.ne.s32.totalorder %s75, %s76
      %p87 = scmp.eq.s32.totalorder %s20, 0
      %p88 = por %p86, %p87
      %p89 = scmp.ne.s32.totalorder %s75, %s76
      %p90 = scmp.eq.s32.totalorder %s21, 1
      %p91 = por %p89, %p90
      %p93 = scmp.ne.s32.totalorder %s76, %s92
      %p94 = scmp.eq.s32.totalorder %s21, 0
      %p95 = por %p93, %p94
      %p96 = scmp.le.s32.totalorder 1, %s15
      %p97 = scmp.lt.s32.totalorder %s15, 3
      %p98 = pnand %p96, %p97
      %p99 = pneg %p98
      // Predicated region
      $region9: #{_sa_v2_batched.1} parent=5 // pred_check
        _
      $region10: #{_sa_v2_batched.1} parent=5 // pred_check_branch
        %101 = sbr.rel (%p98) target = $region12
      $region11: #{_sa_v2_batched.1} parent=5 // pred_region
        %s102 = ssub.s32 %s15, 1
        // Predicated region
        $region13: #{_sa_v2_batched.1} parent=11 // pred_check
          %p103 = pneg %p62
        $region14: #{_sa_v2_batched.1} parent=11 // pred_check_branch
          %105 = sbr.rel (%p103) target = $region16
        $region15: #{_sa_v2_batched.1} parent=11 // pred_region
          %s107 = ssub.s32 1536, 1536
          %108 = vsyncadd [#allocation6], %s107
          %s109 = sshll.u32 [#allocation5], 4
          %s110 = int_to_ptr.vmem [resolvable:$true] %s109
          %115 = dma.hbm_to_vmem [thread:$0]  %s1, 1536, %s110, [#allocation6], 384, 384, 24
        $region16: #{_sa_v2_batched.1} parent=11 // pred_fallthru
          _
      $region12: #{_sa_v2_batched.1} parent=5 // pred_fallthru
        _
      %p116 = scmp.lt.s32.totalorder %s15, 2
      // Predicated region
      $region17: #{_sa_v2_batched.1} parent=5 // pred_check
        %p117 = pneg %p116
      $region18: #{_sa_v2_batched.1} parent=5 // pred_check_branch
        %119 = sbr.rel (%p117) target = $region20
      $region19: #{_sa_v2_batched.1} parent=5 // pred_region
        // Predicated region
        $region21: #{_sa_v2_batched.1} parent=19 // pred_check
          %p120 = pneg %p35
        $region22: #{_sa_v2_batched.1} parent=19 // pred_check_branch
          %122 = sbr.rel (%p120) target = $region24
        $region23: #{_sa_v2_batched.1} parent=19 // pred_region
          %s123 = sand.u32 %s25, 1
          %s124 = scalar_lea.sflag [#allocation3], %s123
          %s125 = sand.u32 %s25, 1
          %s126 = smul.addr %s125, 32
          %s127 = scalar_lea.vmem [#allocation2], %s126
          %s128 = smul.u32 4, %s15
          %s130 = ssub.s32 512, 512
          %131 = vsyncadd %s124, %s130
          %s132 = smul.addr %s128, 128
          %s133 = scalar_lea.hbm %s0, %s132
          %s134 = sshll.u32 %s127, 4
          %s135 = int_to_ptr.vmem [resolvable:$true] %s134
          %140 = dma.hbm_to_vmem [thread:$0]  %s133, 512, %s135, %s124, 128, 128, 8
        $region24: #{_sa_v2_batched.1} parent=19 // pred_fallthru
          _
      $region20: #{_sa_v2_batched.1} parent=5 // pred_fallthru
        _
      %p141 = scmp.le.s32.totalorder 1, %s15
      %p142 = scmp.lt.s32.totalorder %s15, 3
      %p143 = pnand %p141, %p142
      %p144 = pneg %p143
      // Predicated region
      $region25: #{_sa_v2_batched.1} parent=5 // pred_check
        _
      $region26: #{_sa_v2_batched.1} parent=5 // pred_check_branch
        %146 = sbr.rel (%p143) target = $region28
      $region27: #{_sa_v2_batched.1} parent=5 // pred_region
        %s147 = ssub.s32 %s15, 1
        %s148 = sand.u32 %s28, 1
        %s149 = scalar_lea.sflag [#allocation3], %s148
        %s150 = sand.u32 %s28, 1
        %s151 = smul.addr %s150, 32
        %s152 = scalar_lea.vmem [#allocation2], %s151
        // Predicated region
        $region29: #{_sa_v2_batched.1} parent=27 // pred_check
          %p153 = pneg %p41
        $region30: #{_sa_v2_batched.1} parent=27 // pred_check_branch
          %155 = sbr.rel (%p153) target = $region32
        $region31: #{_sa_v2_batched.1} parent=27 // pred_region
          %156 = dma.done %s149, 512
        $region32: #{_sa_v2_batched.1} parent=27 // pred_fallthru
          _
        // Predicated region
        $region33: #{_sa_v2_batched.1} parent=27 // pred_check
          %p157 = pneg %p62
        $region34: #{_sa_v2_batched.1} parent=27 // pred_check_branch
          %159 = sbr.rel (%p157) target = $region36
        $region35: #{_sa_v2_batched.1} parent=27 // pred_region
          %160 = dma.done [#allocation6], 1536
        $region36: #{_sa_v2_batched.1} parent=27 // pred_fallthru
          _
        %s161 = sand.u32 %s28, 1
        %s162 = scalar_lea.sflag [#allocation3], %s161
        %s163 = sand.u32 %s28, 1
        %s164 = smul.addr %s163, 32
        %s165 = scalar_lea.vmem [#allocation2], %s164
        %p166 = pneg %p41
        %p167 = pneg %p38
        %p168 = pneg %p62
        %p169 = pneg %p59
        %p170 = pneg %p88
        %p171 = pneg %p85
        %s172 = sand.u32 %s75, 1
        %s173 = scalar_lea.sflag [#allocation4], %s172
        %s174 = sand.u32 %s75, 1
        %s175 = smul.addr %s174, 32
        %s176 = scalar_lea.vmem [#allocation7], %s175
        %s177 = smul.u32 4, %s20
        %s178 = smul.u32 4, %s20
        %v179 = vld [vmem:[%s152] sm:$0xff]
        %v180 = vld [vmem:[%s152 + $0x8] sm:$0xff]
        %v181 = vld [vmem:[%s152 + $0x10] sm:$0xff]
        %v182 = vld [vmem:[%s152 + $0x18] sm:$0xff]
        %v183 = vld [vmem:[#allocation5] sm:$0xff]
        %v184 = vld [vmem:[#allocation5 + $0x8] sm:$0xff]
        %v185 = vld [vmem:[#allocation5 + $0x10] sm:$0xff]
        %v186 = vld [vmem:[#allocation5 + $0x18] sm:$0xff]
        %v187 = vld [vmem:[#allocation5 + $0x20] sm:$0xff]
        %v188 = vld [vmem:[#allocation5 + $0x28] sm:$0xff]
        %v189 = vld [vmem:[#allocation5 + $0x30] sm:$0xff]
        %v190 = vld [vmem:[#allocation5 + $0x38] sm:$0xff]
        %v191 = vld [vmem:[#allocation5 + $0x40] sm:$0xff]
        %v192 = vld [vmem:[#allocation5 + $0x48] sm:$0xff]
        %v193 = vld [vmem:[#allocation5 + $0x50] sm:$0xff]
        %v194 = vld [vmem:[#allocation5 + $0x58] sm:$0xff]
        %vm195 = vcmask 261120
        %v197 = vsel %vm195, %v179, 0
        %v200 = vsel %vm195, %v180, 0
        %v203 = vsel %vm195, %v181, 0
        %v206 = vsel %vm195, %v182, 0
        %208 = vmatprep.subr.mxu0 0.0
        %209 = vmatpush1.msra.mxu0 0.0
        %210 = vmatprep.subr.mxu0 0.0
        %211 = vmatpush1.msra.mxu0 0.0
        %212 = vmatprep.subr.mxu0 0.0
        %213 = vmatpush1.msra.mxu0 0.0
        %214 = vmatprep.subr.mxu0 0.0
        %215 = vmatpush1.msra.mxu0 0.0
        %216 = vmatprep.subr.mxu0 0.0
        %217 = vmatpush1.msra.mxu0 0.0
        %218 = vmatprep.subr.mxu0 0.0
        %219 = vmatpush1.msra.mxu0 0.0
        %220 = vmatprep.subr.mxu0 0.0
        %221 = vmatpush1.msra.mxu0 0.0
        %222 = vmatprep.subr.mxu0 0.0
        %223 = vmatpush1.msra.mxu0 0.0
        %224 = vmatprep.subr.mxu0 0.0
        %225 = vmatpush1.msra.mxu0 0.0
        %226 = vmatprep.subr.mxu0 0.0
        %227 = vmatpush1.msra.mxu0 0.0
        %228 = vmatprep.subr.mxu0 0.0
        %229 = vmatpush1.msra.mxu0 0.0
        %230 = vmatprep.subr.mxu0 0.0
        %231 = vmatpush1.msra.mxu0 0.0
        %232 = vmatprep.subr.mxu0 %v193
        %233 = vmatpush1.msra.mxu0 %v192
        %234 = vmatprep.subr.mxu0 %v190
        %235 = vmatpush1.msra.mxu0 %v189
        %236 = vmatprep.subr.mxu0 %v187
        %237 = vmatpush1.msra.mxu0 %v186
        %238 = vmatprep.subr.mxu0 %v184
        %239 = vmatpush1.msra.mxu0 %v183
        %240 = vmatprep.subr.mxu0 0.0
        %241 = vmatpush2.msra.mxu0 0.0
        %242 = vmatprep.subr.mxu0 0.0
        %243 = vmatpush2.msra.mxu0 0.0
        %244 = vmatprep.subr.mxu0 0.0
        %245 = vmatpush2.msra.mxu0 0.0
        %246 = vmatprep.subr.mxu0 0.0
        %247 = vmatpush2.msra.mxu0 0.0
        %248 = vmatprep.subr.mxu0 0.0
        %249 = vmatpush2.msra.mxu0 0.0
        %250 = vmatprep.subr.mxu0 0.0
        %251 = vmatpush2.msra.mxu0 0.0
        %252 = vmatprep.subr.mxu0 0.0
        %253 = vmatpush2.msra.mxu0 0.0
        %254 = vmatprep.subr.mxu0 0.0
        %255 = vmatpush2.msra.mxu0 0.0
        %256 = vmatprep.subr.mxu0 0.0
        %257 = vmatpush2.msra.mxu0 0.0
        %258 = vmatprep.subr.mxu0 0.0
        %259 = vmatpush2.msra.mxu0 0.0
        %260 = vmatprep.subr.mxu0 0.0
        %261 = vmatpush2.msra.mxu0 0.0
        %262 = vmatprep.subr.mxu0 0.0
        %263 = vmatpush2.msra.mxu0 0.0
        %264 = vmatprep.subr.mxu0 0.0
        %265 = vmatpush2.msra.mxu0 0.0
        %266 = vmatprep.subr.mxu0 0.0
        %267 = vmatpush2.msra.mxu0 0.0
        %268 = vmatprep.subr.mxu0 0.0
        %269 = vmatpush2.msra.mxu0 0.0
        %270 = vmatprep.subr.mxu0 0.0
        %271 = vmatpush2.msra.mxu0 0.0
        %272 = vmatprep.mubr.f32.mxu0 0.0
        %273 = vmatmul.mubr.f32.gmra.mxu0 %v197
        %v274 = vpop.f32.mrf.mxu0
        %v275 = vadd.f32 0.0, %v274
        %v276 = vpop.f32.mrf.mxu0
        %v277 = vadd.f32 0.0, %v276
        %278 = vmatprep.mubr.f32.mxu0 0.0
        %279 = vmatmul.mubr.f32.gmra.mxu0 %v200
        %v280 = vpop.f32.mrf.mxu0
        %v281 = vadd.f32 0.0, %v280
        %v282 = vpop.f32.mrf.mxu0
        %v283 = vadd.f32 0.0, %v282
        %284 = vmatprep.mubr.f32.mxu0 0.0
        %285 = vmatmul.mubr.f32.gmra.mxu0 %v203
        %v286 = vpop.f32.mrf.mxu0
        %v287 = vadd.f32 0.0, %v286
        %v288 = vpop.f32.mrf.mxu0
        %v289 = vadd.f32 0.0, %v288
        %290 = vmatprep.mubr.f32.mxu0 0.0
        %291 = vmatmul.mubr.f32.gmra.mxu0 %v206
        %v292 = vpop.f32.mrf.mxu0
        %v293 = vadd.f32 0.0, %v292
        %v294 = vpop.f32.mrf.mxu0
        %v295 = vadd.f32 0.0, %v294
        %296 = vdwg.mxu0
        %297 = vmatprep.subr.mxu0 0.0
        %298 = vmatpush1.msra.mxu0 0.0
        %299 = vmatprep.subr.mxu0 0.0
        %300 = vmatpush1.msra.mxu0 0.0
        %301 = vmatprep.subr.mxu0 0.0
        %302 = vmatpush1.msra.mxu0 0.0
        %303 = vmatprep.subr.mxu0 0.0
        %304 = vmatpush1.msra.mxu0 0.0
        %305 = vmatprep.subr.mxu0 0.0
        %306 = vmatpush1.msra.mxu0 0.0
        %307 = vmatprep.subr.mxu0 0.0
        %308 = vmatpush1.msra.mxu0 0.0
        %309 = vmatprep.subr.mxu0 0.0
        %310 = vmatpush1.msra.mxu0 0.0
        %311 = vmatprep.subr.mxu0 0.0
        %312 = vmatpush1.msra.mxu0 0.0
        %313 = vmatprep.subr.mxu0 0.0
        %314 = vmatpush1.msra.mxu0 0.0
        %315 = vmatprep.subr.mxu0 0.0
        %316 = vmatpush1.msra.mxu0 0.0
        %317 = vmatprep.subr.mxu0 0.0
        %318 = vmatpush1.msra.mxu0 0.0
        %319 = vmatprep.subr.mxu0 0.0
        %320 = vmatpush1.msra.mxu0 0.0
        %321 = vmatprep.subr.mxu0 0.0
        %322 = vmatpush1.msra.mxu0 %v194
        %323 = vmatprep.subr.mxu0 0.0
        %324 = vmatpush1.msra.mxu0 %v191
        %325 = vmatprep.subr.mxu0 0.0
        %326 = vmatpush1.msra.mxu0 %v188
        %327 = vmatprep.subr.mxu0 0.0
        %328 = vmatpush1.msra.mxu0 %v185
        %329 = vmatprep.subr.mxu0 0.0
        %330 = vmatpush2.msra.mxu0 0.0
        %331 = vmatprep.subr.mxu0 0.0
        %332 = vmatpush2.msra.mxu0 0.0
        %333 = vmatprep.subr.mxu0 0.0
        %334 = vmatpush2.msra.mxu0 0.0
        %335 = vmatprep.subr.mxu0 0.0
        %336 = vmatpush2.msra.mxu0 0.0
        %337 = vmatprep.subr.mxu0 0.0
        %338 = vmatpush2.msra.mxu0 0.0
        %339 = vmatprep.subr.mxu0 0.0
        %340 = vmatpush2.msra.mxu0 0.0
        %341 = vmatprep.subr.mxu0 0.0
        %342 = vmatpush2.msra.mxu0 0.0
        %343 = vmatprep.subr.mxu0 0.0
        %344 = vmatpush2.msra.mxu0 0.0
        %345 = vmatprep.subr.mxu0 0.0
        %346 = vmatpush2.msra.mxu0 0.0
        %347 = vmatprep.subr.mxu0 0.0
        %348 = vmatpush2.msra.mxu0 0.0
        %349 = vmatprep.subr.mxu0 0.0
        %350 = vmatpush2.msra.mxu0 0.0
        %351 = vmatprep.subr.mxu0 0.0
        %352 = vmatpush2.msra.mxu0 0.0
        %353 = vmatprep.subr.mxu0 0.0
        %354 = vmatpush2.msra.mxu0 0.0
        %355 = vmatprep.subr.mxu0 0.0
        %356 = vmatpush2.msra.mxu0 0.0
        %357 = vmatprep.subr.mxu0 0.0
        %358 = vmatpush2.msra.mxu0 0.0
        %359 = vmatprep.subr.mxu0 0.0
        %360 = vmatpush2.msra.mxu0 0.0
        %361 = vmatprep.mubr.f32.mxu0 0.0
        %362 = vmatmul.mubr.f32.gmra.mxu0 %v197
        %v363 = vpop.f32.mrf.mxu0
        %v364 = vadd.f32 0.0, %v363
        %v365 = vpop.f32.mrf.mxu0
        %366 = vmatprep.mubr.f32.mxu0 0.0
        %367 = vmatmul.mubr.f32.gmra.mxu0 %v200
        %v368 = vpop.f32.mrf.mxu0
        %v369 = vadd.f32 0.0, %v368
        %v370 = vpop.f32.mrf.mxu0
        %371 = vmatprep.mubr.f32.mxu0 0.0
        %372 = vmatmul.mubr.f32.gmra.mxu0 %v203
        %v373 = vpop.f32.mrf.mxu0
        %v374 = vadd.f32 0.0, %v373
        %v375 = vpop.f32.mrf.mxu0
        %376 = vmatprep.mubr.f32.mxu0 0.0
        %377 = vmatmul.mubr.f32.gmra.mxu0 %v206
        %v378 = vpop.f32.mrf.mxu0
        %v379 = vadd.f32 0.0, %v378
        %v380 = vpop.f32.mrf.mxu0
        %381 = vdwg.mxu0
        %382 = vmatprep.subr.mxu0 0.0
        %383 = vmatpush1.xpose.msra.mxu0 0.0
        %384 = vmatprep.subr.mxu0 0.0
        %385 = vmatpush1.xpose.msra.mxu0 0.0
        %386 = vmatprep.subr.mxu0 0.0
        %387 = vmatpush1.xpose.msra.mxu0 0.0
        %388 = vmatprep.subr.mxu0 0.0
        %389 = vmatpush1.xpose.msra.mxu0 0.0
        %390 = vmatprep.subr.mxu0 0.0
        %391 = vmatpush1.xpose.msra.mxu0 0.0
        %392 = vmatprep.subr.mxu0 0.0
        %393 = vmatpush1.xpose.msra.mxu0 0.0
        %394 = vmatprep.subr.mxu0 0.0
        %395 = vmatpush1.xpose.msra.mxu0 0.0
        %396 = vmatprep.subr.mxu0 0.0
        %397 = vmatpush1.xpose.msra.mxu0 0.0
        %398 = vmatprep.subr.mxu0 0.0
        %399 = vmatpush1.xpose.msra.mxu0 0.0
        %400 = vmatprep.subr.mxu0 0.0
        %401 = vmatpush1.xpose.msra.mxu0 0.0
        %402 = vmatprep.subr.mxu0 0.0
        %403 = vmatpush1.xpose.msra.mxu0 0.0
        %404 = vmatprep.subr.mxu0 0.0
        %405 = vmatpush1.xpose.msra.mxu0 0.0
        %406 = vmatprep.subr.mxu0 0.0
        %407 = vmatpush1.xpose.msra.mxu0 0.0
        %408 = vmatprep.subr.mxu0 0.0
        %409 = vmatpush1.xpose.msra.mxu0 0.0
        %410 = vmatprep.subr.mxu0 0.0
        %411 = vmatpush1.xpose.msra.mxu0 0.0
        %412 = vmatprep.subr.mxu0 0.0
        %413 = vmatpush1.xpose.msra.mxu0 %v277
        %414 = vmatprep.subr.mxu0 0.0
        %415 = vmatpush2.xpose.msra.mxu0 0.0
        %416 = vmatprep.subr.mxu0 0.0
        %417 = vmatpush2.xpose.msra.mxu0 0.0
        %418 = vmatprep.subr.mxu0 0.0
        %419 = vmatpush2.xpose.msra.mxu0 0.0
        %420 = vmatprep.subr.mxu0 0.0
        %421 = vmatpush2.xpose.msra.mxu0 0.0
        %422 = vmatprep.subr.mxu0 0.0
        %423 = vmatpush2.xpose.msra.mxu0 0.0
        %424 = vmatprep.subr.mxu0 0.0
        %425 = vmatpush2.xpose.msra.mxu0 0.0
        %426 = vmatprep.subr.mxu0 0.0
        %427 = vmatpush2.xpose.msra.mxu0 0.0
        %428 = vmatprep.subr.mxu0 0.0
        %429 = vmatpush2.xpose.msra.mxu0 0.0
        %430 = vmatprep.subr.mxu0 0.0
        %431 = vmatpush2.xpose.msra.mxu0 0.0
        %432 = vmatprep.subr.mxu0 0.0
        %433 = vmatpush2.xpose.msra.mxu0 0.0
        %434 = vmatprep.subr.mxu0 0.0
        %435 = vmatpush2.xpose.msra.mxu0 0.0
        %436 = vmatprep.subr.mxu0 0.0
        %437 = vmatpush2.xpose.msra.mxu0 0.0
        %438 = vmatprep.subr.mxu0 0.0
        %439 = vmatpush2.xpose.msra.mxu0 0.0
        %440 = vmatprep.subr.mxu0 0.0
        %441 = vmatpush2.xpose.msra.mxu0 0.0
        %442 = vmatprep.subr.mxu0 0.0
        %443 = vmatpush2.xpose.msra.mxu0 0.0
        %444 = vmatprep.subr.mxu0 0.0
        %445 = vmatpush2.xpose.msra.mxu0 0.0
        %446 = vmatprep.mubr.f32.mxu0 0.0
        %447 = vmatmul.mubr.f32.gmra.mxu0 %v275
        %v448 = vpop.f32.mrf.mxu0
        %v449 = vadd.f32 0.0, %v448
        %v450 = vpop.f32.mrf.mxu0
        %451 = vdwg.mxu0
        %452 = vmatprep.subr.mxu0 0.0
        %453 = vmatpush1.xpose.msra.mxu0 0.0
        %454 = vmatprep.subr.mxu0 0.0
        %455 = vmatpush1.xpose.msra.mxu0 0.0
        %456 = vmatprep.subr.mxu0 0.0
        %457 = vmatpush1.xpose.msra.mxu0 0.0
        %458 = vmatprep.subr.mxu0 0.0
        %459 = vmatpush1.xpose.msra.mxu0 0.0
        %460 = vmatprep.subr.mxu0 0.0
        %461 = vmatpush1.xpose.msra.mxu0 0.0
        %462 = vmatprep.subr.mxu0 0.0
        %463 = vmatpush1.xpose.msra.mxu0 0.0
        %464 = vmatprep.subr.mxu0 0.0
        %465 = vmatpush1.xpose.msra.mxu0 0.0
        %466 = vmatprep.subr.mxu0 0.0
        %467 = vmatpush1.xpose.msra.mxu0 0.0
        %468 = vmatprep.subr.mxu0 0.0
        %469 = vmatpush1.xpose.msra.mxu0 0.0
        %470 = vmatprep.subr.mxu0 0.0
        %471 = vmatpush1.xpose.msra.mxu0 0.0
        %472 = vmatprep.subr.mxu0 0.0
        %473 = vmatpush1.xpose.msra.mxu0 0.0
        %474 = vmatprep.subr.mxu0 0.0
        %475 = vmatpush1.xpose.msra.mxu0 0.0
        %476 = vmatprep.subr.mxu0 0.0
        %477 = vmatpush1.xpose.msra.mxu0 0.0
        %478 = vmatprep.subr.mxu0 0.0
        %479 = vmatpush1.xpose.msra.mxu0 0.0
        %480 = vmatprep.subr.mxu0 0.0
        %481 = vmatpush1.xpose.msra.mxu0 0.0
        %482 = vmatprep.subr.mxu0 0.0
        %483 = vmatpush1.xpose.msra.mxu0 %v283
        %484 = vmatprep.subr.mxu0 0.0
        %485 = vmatpush2.xpose.msra.mxu0 0.0
        %486 = vmatprep.subr.mxu0 0.0
        %487 = vmatpush2.xpose.msra.mxu0 0.0
        %488 = vmatprep.subr.mxu0 0.0
        %489 = vmatpush2.xpose.msra.mxu0 0.0
        %490 = vmatprep.subr.mxu0 0.0
        %491 = vmatpush2.xpose.msra.mxu0 0.0
        %492 = vmatprep.subr.mxu0 0.0
        %493 = vmatpush2.xpose.msra.mxu0 0.0
        %494 = vmatprep.subr.mxu0 0.0
        %495 = vmatpush2.xpose.msra.mxu0 0.0
        %496 = vmatprep.subr.mxu0 0.0
        %497 = vmatpush2.xpose.msra.mxu0 0.0
        %498 = vmatprep.subr.mxu0 0.0
        %499 = vmatpush2.xpose.msra.mxu0 0.0
        %500 = vmatprep.subr.mxu0 0.0
        %501 = vmatpush2.xpose.msra.mxu0 0.0
        %502 = vmatprep.subr.mxu0 0.0
        %503 = vmatpush2.xpose.msra.mxu0 0.0
        %504 = vmatprep.subr.mxu0 0.0
        %505 = vmatpush2.xpose.msra.mxu0 0.0
        %506 = vmatprep.subr.mxu0 0.0
        %507 = vmatpush2.xpose.msra.mxu0 0.0
        %508 = vmatprep.subr.mxu0 0.0
        %509 = vmatpush2.xpose.msra.mxu0 0.0
        %510 = vmatprep.subr.mxu0 0.0
        %511 = vmatpush2.xpose.msra.mxu0 0.0
        %512 = vmatprep.subr.mxu0 0.0
        %513 = vmatpush2.xpose.msra.mxu0 0.0
        %514 = vmatprep.subr.mxu0 0.0
        %515 = vmatpush2.xpose.msra.mxu0 0.0
        %516 = vmatprep.mubr.f32.mxu0 0.0
        %517 = vmatmul.mubr.f32.gmra.mxu0 %v281
        %v518 = vpop.f32.mrf.mxu0
        %v519 = vadd.f32 0.0, %v518
        %v520 = vpop.f32.mrf.mxu0
        %521 = vdwg.mxu0
        %522 = vmatprep.subr.mxu0 0.0
        %523 = vmatpush1.xpose.msra.mxu0 0.0
        %524 = vmatprep.subr.mxu0 0.0
        %525 = vmatpush1.xpose.msra.mxu0 0.0
        %526 = vmatprep.subr.mxu0 0.0
        %527 = vmatpush1.xpose.msra.mxu0 0.0
        %528 = vmatprep.subr.mxu0 0.0
        %529 = vmatpush1.xpose.msra.mxu0 0.0
        %530 = vmatprep.subr.mxu0 0.0
        %531 = vmatpush1.xpose.msra.mxu0 0.0
        %532 = vmatprep.subr.mxu0 0.0
        %533 = vmatpush1.xpose.msra.mxu0 0.0
        %534 = vmatprep.subr.mxu0 0.0
        %535 = vmatpush1.xpose.msra.mxu0 0.0
        %536 = vmatprep.subr.mxu0 0.0
        %537 = vmatpush1.xpose.msra.mxu0 0.0
        %538 = vmatprep.subr.mxu0 0.0
        %539 = vmatpush1.xpose.msra.mxu0 0.0
        %540 = vmatprep.subr.mxu0 0.0
        %541 = vmatpush1.xpose.msra.mxu0 0.0
        %542 = vmatprep.subr.mxu0 0.0
        %543 = vmatpush1.xpose.msra.mxu0 0.0
        %544 = vmatprep.subr.mxu0 0.0
        %545 = vmatpush1.xpose.msra.mxu0 0.0
        %546 = vmatprep.subr.mxu0 0.0
        %547 = vmatpush1.xpose.msra.mxu0 0.0
        %548 = vmatprep.subr.mxu0 0.0
        %549 = vmatpush1.xpose.msra.mxu0 0.0
        %550 = vmatprep.subr.mxu0 0.0
        %551 = vmatpush1.xpose.msra.mxu0 0.0
        %552 = vmatprep.subr.mxu0 0.0
        %553 = vmatpush1.xpose.msra.mxu0 %v289
        %554 = vmatprep.subr.mxu0 0.0
        %555 = vmatpush2.xpose.msra.mxu0 0.0
        %556 = vmatprep.subr.mxu0 0.0
        %557 = vmatpush2.xpose.msra.mxu0 0.0
        %558 = vmatprep.subr.mxu0 0.0
        %559 = vmatpush2.xpose.msra.mxu0 0.0
        %560 = vmatprep.subr.mxu0 0.0
        %561 = vmatpush2.xpose.msra.mxu0 0.0
        %562 = vmatprep.subr.mxu0 0.0
        %563 = vmatpush2.xpose.msra.mxu0 0.0
        %564 = vmatprep.subr.mxu0 0.0
        %565 = vmatpush2.xpose.msra.mxu0 0.0
        %566 = vmatprep.subr.mxu0 0.0
        %567 = vmatpush2.xpose.msra.mxu0 0.0
        %568 = vmatprep.subr.mxu0 0.0
        %569 = vmatpush2.xpose.msra.mxu0 0.0
        %570 = vmatprep.subr.mxu0 0.0
        %571 = vmatpush2.xpose.msra.mxu0 0.0
        %572 = vmatprep.subr.mxu0 0.0
        %573 = vmatpush2.xpose.msra.mxu0 0.0
        %574 = vmatprep.subr.mxu0 0.0
        %575 = vmatpush2.xpose.msra.mxu0 0.0
        %576 = vmatprep.subr.mxu0 0.0
        %577 = vmatpush2.xpose.msra.mxu0 0.0
        %578 = vmatprep.subr.mxu0 0.0
        %579 = vmatpush2.xpose.msra.mxu0 0.0
        %580 = vmatprep.subr.mxu0 0.0
        %581 = vmatpush2.xpose.msra.mxu0 0.0
        %582 = vmatprep.subr.mxu0 0.0
        %583 = vmatpush2.xpose.msra.mxu0 0.0
        %584 = vmatprep.subr.mxu0 0.0
        %585 = vmatpush2.xpose.msra.mxu0 0.0
        %586 = vmatprep.mubr.f32.mxu0 0.0
        %587 = vmatmul.mubr.f32.gmra.mxu0 %v287
        %v588 = vpop.f32.mrf.mxu0
        %v589 = vadd.f32 0.0, %v588
        %v590 = vpop.f32.mrf.mxu0
        %591 = vdwg.mxu0
        %592 = vmatprep.subr.mxu0 0.0
        %593 = vmatpush1.xpose.msra.mxu0 0.0
        %594 = vmatprep.subr.mxu0 0.0
        %595 = vmatpush1.xpose.msra.mxu0 0.0
        %596 = vmatprep.subr.mxu0 0.0
        %597 = vmatpush1.xpose.msra.mxu0 0.0
        %598 = vmatprep.subr.mxu0 0.0
        %599 = vmatpush1.xpose.msra.mxu0 0.0
        %600 = vmatprep.subr.mxu0 0.0
        %601 = vmatpush1.xpose.msra.mxu0 0.0
        %602 = vmatprep.subr.mxu0 0.0
        %603 = vmatpush1.xpose.msra.mxu0 0.0
        %604 = vmatprep.subr.mxu0 0.0
        %605 = vmatpush1.xpose.msra.mxu0 0.0
        %606 = vmatprep.subr.mxu0 0.0
        %607 = vmatpush1.xpose.msra.mxu0 0.0
        %608 = vmatprep.subr.mxu0 0.0
        %609 = vmatpush1.xpose.msra.mxu0 0.0
        %610 = vmatprep.subr.mxu0 0.0
        %611 = vmatpush1.xpose.msra.mxu0 0.0
        %612 = vmatprep.subr.mxu0 0.0
        %613 = vmatpush1.xpose.msra.mxu0 0.0
        %614 = vmatprep.subr.mxu0 0.0
        %615 = vmatpush1.xpose.msra.mxu0 0.0
        %616 = vmatprep.subr.mxu0 0.0
        %617 = vmatpush1.xpose.msra.mxu0 0.0
        %618 = vmatprep.subr.mxu0 0.0
        %619 = vmatpush1.xpose.msra.mxu0 0.0
        %620 = vmatprep.subr.mxu0 0.0
        %621 = vmatpush1.xpose.msra.mxu0 0.0
        %622 = vmatprep.subr.mxu0 0.0
        %623 = vmatpush1.xpose.msra.mxu0 %v295
        %624 = vmatprep.subr.mxu0 0.0
        %625 = vmatpush2.xpose.msra.mxu0 0.0
        %626 = vmatprep.subr.mxu0 0.0
        %627 = vmatpush2.xpose.msra.mxu0 0.0
        %628 = vmatprep.subr.mxu0 0.0
        %629 = vmatpush2.xpose.msra.mxu0 0.0
        %630 = vmatprep.subr.mxu0 0.0
        %631 = vmatpush2.xpose.msra.mxu0 0.0
        %632 = vmatprep.subr.mxu0 0.0
        %633 = vmatpush2.xpose.msra.mxu0 0.0
        %634 = vmatprep.subr.mxu0 0.0
        %635 = vmatpush2.xpose.msra.mxu0 0.0
        %636 = vmatprep.subr.mxu0 0.0
        %637 = vmatpush2.xpose.msra.mxu0 0.0
        %638 = vmatprep.subr.mxu0 0.0
        %639 = vmatpush2.xpose.msra.mxu0 0.0
        %640 = vmatprep.subr.mxu0 0.0
        %641 = vmatpush2.xpose.msra.mxu0 0.0
        %642 = vmatprep.subr.mxu0 0.0
        %643 = vmatpush2.xpose.msra.mxu0 0.0
        %644 = vmatprep.subr.mxu0 0.0
        %645 = vmatpush2.xpose.msra.mxu0 0.0
        %646 = vmatprep.subr.mxu0 0.0
        %647 = vmatpush2.xpose.msra.mxu0 0.0
        %648 = vmatprep.subr.mxu0 0.0
        %649 = vmatpush2.xpose.msra.mxu0 0.0
        %650 = vmatprep.subr.mxu0 0.0
        %651 = vmatpush2.xpose.msra.mxu0 0.0
        %652 = vmatprep.subr.mxu0 0.0
        %653 = vmatpush2.xpose.msra.mxu0 0.0
        %654 = vmatprep.subr.mxu0 0.0
        %655 = vmatpush2.xpose.msra.mxu0 0.0
        %656 = vmatprep.mubr.f32.mxu0 0.0
        %657 = vmatmul.mubr.f32.gmra.mxu0 %v293
        %v658 = vpop.f32.mrf.mxu0
        %v659 = vadd.f32 0.0, %v658
        %v660 = vpop.f32.mrf.mxu0
        %661 = vdwg.mxu0
        %vm662 = vcmask 64512
        %v663 = vsel %vm662, %v449, -inf
        %664 = vmax.xlane.f32.xlu0 %v663
        %v665 = vpop.xlane.xlu0 %664
        %v666 = vsel %vm662, %v519, -inf
        %667 = vmax.xlane.f32.xlu0 %v666
        %v668 = vpop.xlane.xlu0 %667
        %v669 = vsel %vm662, %v589, -inf
        %670 = vmax.xlane.f32.xlu0 %v669
        %v671 = vpop.xlane.xlu0 %670
        %v672 = vsel %vm662, %v659, -inf
        %673 = vmax.xlane.f32.xlu0 %v672
        %v674 = vpop.xlane.xlu0 %673
        %v675 = vsub.f32 %v449, %v665
        %v676 = vsub.f32 %v519, %v668
        %v677 = vsub.f32 %v589, %v671
        %v678 = vsub.f32 %v659, %v674
        %v679 = vmul.f32 %v675, 1.442695
        %v680 = vpow.pop %v679
        %v681 = vmul.f32 %v676, 1.442695
        %v682 = vpow.pop %v681
        %v683 = vmul.f32 %v677, 1.442695
        %v684 = vpow.pop %v683
        %v685 = vmul.f32 %v678, 1.442695
        %v686 = vpow.pop %v685
        %v687 = vsel %vm662, %v680, 0.0
        %688 = vadd.xlane.f32.xlu0 %v687
        %v689 = vpop.xlane.xlu0 %688
        %v690 = vsel %vm662, %v682, 0.0
        %691 = vadd.xlane.f32.xlu0 %v690
        %v692 = vpop.xlane.xlu0 %691
        %v693 = vsel %vm662, %v684, 0.0
        %694 = vadd.xlane.f32.xlu0 %v693
        %v695 = vpop.xlane.xlu0 %694
        %v696 = vsel %vm662, %v686, 0.0
        %697 = vadd.xlane.f32.xlu0 %v696
        %v698 = vpop.xlane.xlu0 %697
        %v699 = vrcp.pop %v689
        %v700 = vrcp.pop %v692
        %v701 = vrcp.pop %v695
        %v702 = vrcp.pop %v698
        %v703 = vmul.f32 %v680, %v699
        %v704 = vmul.f32 %v682, %v700
        %v705 = vmul.f32 %v684, %v701
        %v706 = vmul.f32 %v686, %v702
        %v708 = vsel %vm662, %v703, 0
        %710 = vmatprep.subr.mxu0 0.0
        %711 = vmatpush1.msra.mxu0 0.0
        %712 = vmatprep.subr.mxu0 0.0
        %713 = vmatpush1.msra.mxu0 0.0
        %714 = vmatprep.subr.mxu0 0.0
        %715 = vmatpush1.msra.mxu0 0.0
        %716 = vmatprep.subr.mxu0 0.0
        %717 = vmatpush1.msra.mxu0 0.0
        %718 = vmatprep.subr.mxu0 0.0
        %719 = vmatpush1.msra.mxu0 0.0
        %720 = vmatprep.subr.mxu0 0.0
        %721 = vmatpush1.msra.mxu0 0.0
        %722 = vmatprep.subr.mxu0 0.0
        %723 = vmatpush1.msra.mxu0 0.0
        %724 = vmatprep.subr.mxu0 0.0
        %725 = vmatpush1.msra.mxu0 0.0
        %726 = vmatprep.subr.mxu0 0.0
        %727 = vmatpush1.msra.mxu0 0.0
        %728 = vmatprep.subr.mxu0 0.0
        %729 = vmatpush1.msra.mxu0 0.0
        %730 = vmatprep.subr.mxu0 0.0
        %731 = vmatpush1.msra.mxu0 0.0
        %732 = vmatprep.subr.mxu0 0.0
        %733 = vmatpush1.msra.mxu0 0.0
        %734 = vmatprep.subr.mxu0 0.0
        %735 = vmatpush1.msra.mxu0 0.0
        %736 = vmatprep.subr.mxu0 0.0
        %737 = vmatpush1.msra.mxu0 0.0
        %738 = vmatprep.subr.mxu0 0.0
        %739 = vmatpush1.msra.mxu0 0.0
        %740 = vmatprep.subr.mxu0 0.0
        %741 = vmatpush1.msra.mxu0 %v364
        %742 = vmatprep.subr.mxu0 0.0
        %743 = vmatpush2.msra.mxu0 0.0
        %744 = vmatprep.subr.mxu0 0.0
        %745 = vmatpush2.msra.mxu0 0.0
        %746 = vmatprep.subr.mxu0 0.0
        %747 = vmatpush2.msra.mxu0 0.0
        %748 = vmatprep.subr.mxu0 0.0
        %749 = vmatpush2.msra.mxu0 0.0
        %750 = vmatprep.subr.mxu0 0.0
        %751 = vmatpush2.msra.mxu0 0.0
        %752 = vmatprep.subr.mxu0 0.0
        %753 = vmatpush2.msra.mxu0 0.0
        %754 = vmatprep.subr.mxu0 0.0
        %755 = vmatpush2.msra.mxu0 0.0
        %756 = vmatprep.subr.mxu0 0.0
        %757 = vmatpush2.msra.mxu0 0.0
        %758 = vmatprep.subr.mxu0 0.0
        %759 = vmatpush2.msra.mxu0 0.0
        %760 = vmatprep.subr.mxu0 0.0
        %761 = vmatpush2.msra.mxu0 0.0
        %762 = vmatprep.subr.mxu0 0.0
        %763 = vmatpush2.msra.mxu0 0.0
        %764 = vmatprep.subr.mxu0 0.0
        %765 = vmatpush2.msra.mxu0 0.0
        %766 = vmatprep.subr.mxu0 0.0
        %767 = vmatpush2.msra.mxu0 0.0
        %768 = vmatprep.subr.mxu0 0.0
        %769 = vmatpush2.msra.mxu0 0.0
        %770 = vmatprep.subr.mxu0 0.0
        %771 = vmatpush2.msra.mxu0 0.0
        %772 = vmatprep.subr.mxu0 0.0
        %773 = vmatpush2.msra.mxu0 0.0
        %774 = vmatprep.mubr.f32.mxu0 0.0
        %775 = vmatmul.mubr.f32.gmra.mxu0 %v708
        %v776 = vpop.f32.mrf.mxu0
        %v777 = vadd.f32 0.0, %v776
        %v778 = vpop.f32.mrf.mxu0
        %779 = vdwg.mxu0
        %v781 = vsel %vm662, %v704, 0
        %783 = vmatprep.subr.mxu0 0.0
        %784 = vmatpush1.msra.mxu0 0.0
        %785 = vmatprep.subr.mxu0 0.0
        %786 = vmatpush1.msra.mxu0 0.0
        %787 = vmatprep.subr.mxu0 0.0
        %788 = vmatpush1.msra.mxu0 0.0
        %789 = vmatprep.subr.mxu0 0.0
        %790 = vmatpush1.msra.mxu0 0.0
        %791 = vmatprep.subr.mxu0 0.0
        %792 = vmatpush1.msra.mxu0 0.0
        %793 = vmatprep.subr.mxu0 0.0
        %794 = vmatpush1.msra.mxu0 0.0
        %795 = vmatprep.subr.mxu0 0.0
        %796 = vmatpush1.msra.mxu0 0.0
        %797 = vmatprep.subr.mxu0 0.0
        %798 = vmatpush1.msra.mxu0 0.0
        %799 = vmatprep.subr.mxu0 0.0
        %800 = vmatpush1.msra.mxu0 0.0
        %801 = vmatprep.subr.mxu0 0.0
        %802 = vmatpush1.msra.mxu0 0.0
        %803 = vmatprep.subr.mxu0 0.0
        %804 = vmatpush1.msra.mxu0 0.0
        %805 = vmatprep.subr.mxu0 0.0
        %806 = vmatpush1.msra.mxu0 0.0
        %807 = vmatprep.subr.mxu0 0.0
        %808 = vmatpush1.msra.mxu0 0.0
        %809 = vmatprep.subr.mxu0 0.0
        %810 = vmatpush1.msra.mxu0 0.0
        %811 = vmatprep.subr.mxu0 0.0
        %812 = vmatpush1.msra.mxu0 0.0
        %813 = vmatprep.subr.mxu0 0.0
        %814 = vmatpush1.msra.mxu0 %v369
        %815 = vmatprep.subr.mxu0 0.0
        %816 = vmatpush2.msra.mxu0 0.0
        %817 = vmatprep.subr.mxu0 0.0
        %818 = vmatpush2.msra.mxu0 0.0
        %819 = vmatprep.subr.mxu0 0.0
        %820 = vmatpush2.msra.mxu0 0.0
        %821 = vmatprep.subr.mxu0 0.0
        %822 = vmatpush2.msra.mxu0 0.0
        %823 = vmatprep.subr.mxu0 0.0
        %824 = vmatpush2.msra.mxu0 0.0
        %825 = vmatprep.subr.mxu0 0.0
        %826 = vmatpush2.msra.mxu0 0.0
        %827 = vmatprep.subr.mxu0 0.0
        %828 = vmatpush2.msra.mxu0 0.0
        %829 = vmatprep.subr.mxu0 0.0
        %830 = vmatpush2.msra.mxu0 0.0
        %831 = vmatprep.subr.mxu0 0.0
        %832 = vmatpush2.msra.mxu0 0.0
        %833 = vmatprep.subr.mxu0 0.0
        %834 = vmatpush2.msra.mxu0 0.0
        %835 = vmatprep.subr.mxu0 0.0
        %836 = vmatpush2.msra.mxu0 0.0
        %837 = vmatprep.subr.mxu0 0.0
        %838 = vmatpush2.msra.mxu0 0.0
        %839 = vmatprep.subr.mxu0 0.0
        %840 = vmatpush2.msra.mxu0 0.0
        %841 = vmatprep.subr.mxu0 0.0
        %842 = vmatpush2.msra.mxu0 0.0
        %843 = vmatprep.subr.mxu0 0.0
        %844 = vmatpush2.msra.mxu0 0.0
        %845 = vmatprep.subr.mxu0 0.0
        %846 = vmatpush2.msra.mxu0 0.0
        %847 = vmatprep.mubr.f32.mxu0 0.0
        %848 = vmatmul.mubr.f32.gmra.mxu0 %v781
        %v849 = vpop.f32.mrf.mxu0
        %v850 = vadd.f32 0.0, %v849
        %v851 = vpop.f32.mrf.mxu0
        %852 = vdwg.mxu0
        %v854 = vsel %vm662, %v705, 0
        %856 = vmatprep.subr.mxu0 0.0
        %857 = vmatpush1.msra.mxu0 0.0
        %858 = vmatprep.subr.mxu0 0.0
        %859 = vmatpush1.msra.mxu0 0.0
        %860 = vmatprep.subr.mxu0 0.0
        %861 = vmatpush1.msra.mxu0 0.0
        %862 = vmatprep.subr.mxu0 0.0
        %863 = vmatpush1.msra.mxu0 0.0
        %864 = vmatprep.subr.mxu0 0.0
        %865 = vmatpush1.msra.mxu0 0.0
        %866 = vmatprep.subr.mxu0 0.0
        %867 = vmatpush1.msra.mxu0 0.0
        %868 = vmatprep.subr.mxu0 0.0
        %869 = vmatpush1.msra.mxu0 0.0
        %870 = vmatprep.subr.mxu0 0.0
        %871 = vmatpush1.msra.mxu0 0.0
        %872 = vmatprep.subr.mxu0 0.0
        %873 = vmatpush1.msra.mxu0 0.0
        %874 = vmatprep.subr.mxu0 0.0
        %875 = vmatpush1.msra.mxu0 0.0
        %876 = vmatprep.subr.mxu0 0.0
        %877 = vmatpush1.msra.mxu0 0.0
        %878 = vmatprep.subr.mxu0 0.0
        %879 = vmatpush1.msra.mxu0 0.0
        %880 = vmatprep.subr.mxu0 0.0
        %881 = vmatpush1.msra.mxu0 0.0
        %882 = vmatprep.subr.mxu0 0.0
        %883 = vmatpush1.msra.mxu0 0.0
        %884 = vmatprep.subr.mxu0 0.0
        %885 = vmatpush1.msra.mxu0 0.0
        %886 = vmatprep.subr.mxu0 0.0
        %887 = vmatpush1.msra.mxu0 %v374
        %888 = vmatprep.subr.mxu0 0.0
        %889 = vmatpush2.msra.mxu0 0.0
        %890 = vmatprep.subr.mxu0 0.0
        %891 = vmatpush2.msra.mxu0 0.0
        %892 = vmatprep.subr.mxu0 0.0
        %893 = vmatpush2.msra.mxu0 0.0
        %894 = vmatprep.subr.mxu0 0.0
        %895 = vmatpush2.msra.mxu0 0.0
        %896 = vmatprep.subr.mxu0 0.0
        %897 = vmatpush2.msra.mxu0 0.0
        %898 = vmatprep.subr.mxu0 0.0
        %899 = vmatpush2.msra.mxu0 0.0
        %900 = vmatprep.subr.mxu0 0.0
        %901 = vmatpush2.msra.mxu0 0.0
        %902 = vmatprep.subr.mxu0 0.0
        %903 = vmatpush2.msra.mxu0 0.0
        %904 = vmatprep.subr.mxu0 0.0
        %905 = vmatpush2.msra.mxu0 0.0
        %906 = vmatprep.subr.mxu0 0.0
        %907 = vmatpush2.msra.mxu0 0.0
        %908 = vmatprep.subr.mxu0 0.0
        %909 = vmatpush2.msra.mxu0 0.0
        %910 = vmatprep.subr.mxu0 0.0
        %911 = vmatpush2.msra.mxu0 0.0
        %912 = vmatprep.subr.mxu0 0.0
        %913 = vmatpush2.msra.mxu0 0.0
        %914 = vmatprep.subr.mxu0 0.0
        %915 = vmatpush2.msra.mxu0 0.0
        %916 = vmatprep.subr.mxu0 0.0
        %917 = vmatpush2.msra.mxu0 0.0
        %918 = vmatprep.subr.mxu0 0.0
        %919 = vmatpush2.msra.mxu0 0.0
        %920 = vmatprep.mubr.f32.mxu0 0.0
        %921 = vmatmul.mubr.f32.gmra.mxu0 %v854
        %v922 = vpop.f32.mrf.mxu0
        %v923 = vadd.f32 0.0, %v922
        %v924 = vpop.f32.mrf.mxu0
        %925 = vdwg.mxu0
        %v927 = vsel %vm662, %v706, 0
        %929 = vmatprep.subr.mxu0 0.0
        %930 = vmatpush1.msra.mxu0 0.0
        %931 = vmatprep.subr.mxu0 0.0
        %932 = vmatpush1.msra.mxu0 0.0
        %933 = vmatprep.subr.mxu0 0.0
        %934 = vmatpush1.msra.mxu0 0.0
        %935 = vmatprep.subr.mxu0 0.0
        %936 = vmatpush1.msra.mxu0 0.0
        %937 = vmatprep.subr.mxu0 0.0
        %938 = vmatpush1.msra.mxu0 0.0
        %939 = vmatprep.subr.mxu0 0.0
        %940 = vmatpush1.msra.mxu0 0.0
        %941 = vmatprep.subr.mxu0 0.0
        %942 = vmatpush1.msra.mxu0 0.0
        %943 = vmatprep.subr.mxu0 0.0
        %944 = vmatpush1.msra.mxu0 0.0
        %945 = vmatprep.subr.mxu0 0.0
        %946 = vmatpush1.msra.mxu0 0.0
        %947 = vmatprep.subr.mxu0 0.0
        %948 = vmatpush1.msra.mxu0 0.0
        %949 = vmatprep.subr.mxu0 0.0
        %950 = vmatpush1.msra.mxu0 0.0
        %951 = vmatprep.subr.mxu0 0.0
        %952 = vmatpush1.msra.mxu0 0.0
        %953 = vmatprep.subr.mxu0 0.0
        %954 = vmatpush1.msra.mxu0 0.0
        %955 = vmatprep.subr.mxu0 0.0
        %956 = vmatpush1.msra.mxu0 0.0
        %957 = vmatprep.subr.mxu0 0.0
        %958 = vmatpush1.msra.mxu0 0.0
        %959 = vmatprep.subr.mxu0 0.0
        %960 = vmatpush1.msra.mxu0 %v379
        %961 = vmatprep.subr.mxu0 0.0
        %962 = vmatpush2.msra.mxu0 0.0
        %963 = vmatprep.subr.mxu0 0.0
        %964 = vmatpush2.msra.mxu0 0.0
        %965 = vmatprep.subr.mxu0 0.0
        %966 = vmatpush2.msra.mxu0 0.0
        %967 = vmatprep.subr.mxu0 0.0
        %968 = vmatpush2.msra.mxu0 0.0
        %969 = vmatprep.subr.mxu0 0.0
        %970 = vmatpush2.msra.mxu0 0.0
        %971 = vmatprep.subr.mxu0 0.0
        %972 = vmatpush2.msra.mxu0 0.0
        %973 = vmatprep.subr.mxu0 0.0
        %974 = vmatpush2.msra.mxu0 0.0
        %975 = vmatprep.subr.mxu0 0.0
        %976 = vmatpush2.msra.mxu0 0.0
        %977 = vmatprep.subr.mxu0 0.0
        %978 = vmatpush2.msra.mxu0 0.0
        %979 = vmatprep.subr.mxu0 0.0
        %980 = vmatpush2.msra.mxu0 0.0
        %981 = vmatprep.subr.mxu0 0.0
        %982 = vmatpush2.msra.mxu0 0.0
        %983 = vmatprep.subr.mxu0 0.0
        %984 = vmatpush2.msra.mxu0 0.0
        %985 = vmatprep.subr.mxu0 0.0
        %986 = vmatpush2.msra.mxu0 0.0
        %987 = vmatprep.subr.mxu0 0.0
        %988 = vmatpush2.msra.mxu0 0.0
        %989 = vmatprep.subr.mxu0 0.0
        %990 = vmatpush2.msra.mxu0 0.0
        %991 = vmatprep.subr.mxu0 0.0
        %992 = vmatpush2.msra.mxu0 0.0
        %993 = vmatprep.mubr.f32.mxu0 0.0
        %994 = vmatmul.mubr.f32.gmra.mxu0 %v927
        %v995 = vpop.f32.mrf.mxu0
        %v996 = vadd.f32 0.0, %v995
        %v997 = vpop.f32.mrf.mxu0
        %998 = vdwg.mxu0
        %999 = vst [vmem:[%s176] sm:$0xff] %v777
        %1000 = vst [vmem:[%s176 + $0x8] sm:$0xff] %v850
        %1001 = vst [vmem:[%s176 + $0x10] sm:$0xff] %v923
        %1002 = vst [vmem:[%s176 + $0x18] sm:$0xff] %v996
        %s1003 = sand.u32 %s75, 1
        %s1004 = scalar_lea.sflag [#allocation4], %s1003
        %s1005 = sand.u32 %s75, 1
        %s1006 = smul.addr %s1005, 32
        %s1007 = scalar_lea.vmem [#allocation7], %s1006
        // Predicated region
        $region37: #{_sa_v2_batched.1} parent=27 // pred_check
          %p1008 = pneg %p85
        $region38: #{_sa_v2_batched.1} parent=27 // pred_check_branch
          %1010 = sbr.rel (%p1008) target = $region40
        $region39: #{_sa_v2_batched.1} parent=27 // pred_region
          %s1011 = smul.u32 4, %s20
          %s1013 = ssub.s32 512, 512
          %1014 = vsyncadd %s1004, %s1013
          %s1015 = smul.addr %s1011, 128
          %s1016 = scalar_lea.hbm %s2, %s1015
          %s1017 = sshll.u32 %s1007, 4
          %s1018 = int_to_ptr.vmem [resolvable:$true] %s1017
          %1023 = dma.vmem_to_hbm [thread:$0]  %s1018, 512, %s1016, %s1004, 128, 128, 8
        $region40: #{_sa_v2_batched.1} parent=27 // pred_fallthru
          _
      $region28: #{_sa_v2_batched.1} parent=5 // pred_fallthru
        _
      %p1024 = scmp.le.s32.totalorder 2, %s15
      // Predicated region
      $region41: #{_sa_v2_batched.1} parent=5 // pred_check
        %p1025 = pneg %p1024
      $region42: #{_sa_v2_batched.1} parent=5 // pred_check_branch
        %1027 = sbr.rel (%p1025) target = $region44
      $region43: #{_sa_v2_batched.1} parent=5 // pred_region
        %s1028 = ssub.s32 %s15, 2
        // Predicated region
        $region45: #{_sa_v2_batched.1} parent=43 // pred_check
          %p1029 = pneg %p91
        $region46: #{_sa_v2_batched.1} parent=43 // pred_check_branch
          %1031 = sbr.rel (%p1029) target = $region48
        $region47: #{_sa_v2_batched.1} parent=43 // pred_region
          %s1032 = sand.u32 %s76, 1
          %s1033 = scalar_lea.sflag [#allocation4], %s1032
          %s1034 = sand.u32 %s76, 1
          %s1035 = smul.addr %s1034, 32
          %s1036 = scalar_lea.vmem [#allocation7], %s1035
          %1037 = dma.done %s1033, 512
        $region48: #{_sa_v2_batched.1} parent=43 // pred_fallthru
          _
      $region44: #{_sa_v2_batched.1} parent=5 // pred_fallthru
        _
    $region6: #{_sa_v2_batched.1} parent=1 // loop_footer
      %s19 = sadd.s32 1, %s15
    $region7: #{_sa_v2_batched.1} parent=1 // loop_footer_branch
      %14 = sbr.rel target = $region3
    $region8: #{_sa_v2_batched.1} parent=1 // loop_exit
      _
    %1038 = vsyncpa [#allocation3], 1
    %s1039 = scalar_lea.sflag [#allocation3], 1
    %1040 = vsyncpa %s1039, 1
    %1041 = vsyncpa [#allocation6], 1
    %1042 = vsyncpa [#allocation4], 1
    %s1043 = scalar_lea.sflag [#allocation4], 1
    %1044 = vsyncpa %s1043, 1

</llo_original>
